<compile_context>
chip_gen: v7x
topology: tpu7x:2x2x1
jax: 0.10.0
libtpu: 0.0.40
codegen_flags: <defaults>
</compile_context>

<pallas_src>
import functools

import jax
import jax.numpy as jnp
from jax.experimental import pallas as pl
from jax.experimental.pallas import tpu as pltpu


def _round_up(a: int, b: int) -> int:
    return ((a + b - 1) // b) * b


def _cdiv(a: int, b: int) -> int:
    return -(-a // b)


def _head_dims(B: int, D: int, N: int, tb: int, tk: int):
    """Pick lane-dense / sublane-aligned tile sizes with minimal padding."""
    NP = _round_up(max(N, 128), 128)            # lane-dense class dim
    TK = min(tk, _round_up(D, 128))             # 128-aligned K tile
    D_pad = _round_up(D, TK)
    # Minimize batch padding: as many <=tb blocks as needed, each 8-aligned.
    n_blk = max(1, _cdiv(B, tb))
    TB = _round_up(_cdiv(B, n_blk), 8)
    # v7x megacore: prefer >=2 batch blocks on the "parallel" axis when possible.
    if _cdiv(B, TB) == 1 and TB >= 16:
        TB = _round_up(TB // 2, 8)
    B_pad = _round_up(B, TB)
    return TB, TK, NP, B_pad, D_pad


def _head_kernel(x_ref, w_ref, b_ref, logits_ref, probs_ref, preds_ref, acc_ref,
                 *, num_classes: int, tk: int, w_resident: bool):
    # x_ref: [TB, TK] bf16
    # w_ref: [D_pad, NP] bf16 (resident) or [TK, NP] bf16 (K-tiled)
    # b_ref: [1, NP] f32
    # logits/probs: [TB, NP] f32; preds: [TB, 128] int32 (lane-broadcast)
    k = pl.program_id(1)

    @pl.when(k == 0)
    def _init():
        acc_ref[...] = jnp.zeros_like(acc_ref)

    if w_resident:
        w_blk = w_ref[pl.ds(pl.multiple_of(k * tk, 128), tk), :]
    else:
        w_blk = w_ref[...]

    # bf16 x bf16 -> f32 accumulate on the MXU.
    acc_ref[...] += jnp.dot(x_ref[...], w_blk, preferred_element_type=jnp.float32)

    @pl.when(k == pl.num_programs(1) - 1)
    def _finalize():
        logits = acc_ref[...] + b_ref[...]                            # f32 [TB, NP]
        col = jax.lax.broadcasted_iota(jnp.int32, logits.shape, 1)    # [TB, NP]
        valid = col < num_classes
        masked = jnp.where(valid, logits, jnp.float32(-jnp.inf))
        logits_ref[...] = masked.astype(logits_ref.dtype)

        # torch.softmax(outputs, dim=1) over the real classes only.
        m = jnp.max(masked, axis=1, keepdims=True)                    # [TB, 1]
        e = jnp.where(valid, jnp.exp(masked - m), 0.0)                # [TB, NP]
        denom = jnp.sum(e, axis=1, keepdims=True)                     # [TB, 1]
        probs_ref[...] = (e / denom).astype(probs_ref.dtype)          # exact divide

        # outputs.max(1) -> first-occurrence argmax (matches torch tie-break).
        is_max = masked == m
        pred = jnp.min(jnp.where(is_max, col, logits.shape[1]),
                       axis=1, keepdims=True)                         # [TB, 1] int32
        preds_ref[...] = jnp.broadcast_to(pred, preds_ref.shape).astype(preds_ref.dtype)


def prepare_head_params(weight, bias, *, tk: int = 2048):
    """Pad + cast parameters once (hoisted out of the per-call path).

    weight: [D, N]; bias: [N]  ->  (w_p [D_pad, NP] bf16, b_p [1, NP] f32)
    """
    D, N = int(weight.shape[0]), int(weight.shape[1])
    NP = _round_up(max(N, 128), 128)
    TK = min(tk, _round_up(D, 128))
    D_pad = _round_up(D, TK)
    w_p = jnp.zeros((D_pad, NP), jnp.bfloat16).at[:D, :N].set(weight.astype(jnp.bfloat16))
    b_p = jnp.zeros((1, NP), jnp.float32).at[0, :N].set(bias.astype(jnp.float32))
    return w_p, b_p


@functools.partial(jax.jit, static_argnames=("num_classes", "tb", "tk"))
def _head_call(x_nchw, w_p, b_p, *, num_classes: int, tb: int = 512, tk: int = 2048):
    B = int(x_nchw.shape[0])
    D = 1
    for s in x_nchw.shape[1:]:
        D *= int(s)
    NP = int(w_p.shape[1])
    D_pad_w = int(w_p.shape[0])

    TB, TK, NP_c, B_pad, D_pad = _head_dims(B, D, num_classes, tb, tk)
    assert NP_c == NP and D_pad == D_pad_w, "params prepared with different tk"
    assert D_pad % TK == 0 and B_pad % TB == 0

    # Keep activations bf16 in HBM (halves DMA bytes on this mem-bound head).
    x_flat = x_nchw.reshape(B, D).astype(jnp.bfloat16)
    if B_pad == B and D_pad == D:
        x_p = x_flat                                   # no pad copy needed
    else:
        x_p = jnp.pad(x_flat, ((0, B_pad - B), (0, D_pad - D)))

    # Keep W resident in VMEM when it comfortably fits (removes per-batch-tile
    # re-fetch); otherwise fall back to K-tiled W blocks.
    w_resident = (D_pad * NP * 2) <= (12 * 1024 * 1024)
    if w_resident:
        w_spec = pl.BlockSpec((D_pad, NP), lambda i, k: (0, 0))
    else:
        w_spec = pl.BlockSpec((TK, NP), lambda i, k: (k, 0))

    grid = (B_pad // TB, D_pad // TK)
    kernel = functools.partial(_head_kernel, num_classes=num_classes,
                               tk=TK, w_resident=w_resident)

    out_shapes = (
        jax.ShapeDtypeStruct((B_pad, NP), jnp.float32),   # logits (padded)
        jax.ShapeDtypeStruct((B_pad, NP), jnp.float32),   # probs  (padded)
        jax.ShapeDtypeStruct((B_pad, 128), jnp.int32),    # preds  (lane-broadcast)
    )

    logits_p, probs_p, preds_p = pl.pallas_call(
        kernel,
        out_shape=out_shapes,
        grid_spec=pltpu.PrefetchScalarGridSpec(
            num_scalar_prefetch=0,
            grid=grid,
            in_specs=[
                pl.BlockSpec((TB, TK), lambda i, k: (i, k)),   # x tile (streamed)
                w_spec,                                        # W (resident or tiled)
                pl.BlockSpec((1, NP), lambda i, k: (0, 0)),    # bias
            ],
            out_specs=[
                pl.BlockSpec((TB, NP), lambda i, k: (i, 0)),
                pl.BlockSpec((TB, NP), lambda i, k: (i, 0)),
                pl.BlockSpec((TB, 128), lambda i, k: (i, 0)),
            ],
            scratch_shapes=[pltpu.VMEM((TB, NP), jnp.float32)],
        ),
        compiler_params=pltpu.CompilerParams(
            dimension_semantics=("parallel", "arbitrary"),
            vmem_limit_bytes=48 * 1024 * 1024,   # <= v7x's 64 MiB physical
        ),
    )(x_p, w_p, b_p)

    logits = logits_p[:B, :num_classes]
    probs = probs_p[:B, :num_classes]
    preds = preds_p[:B, 0]
    return logits, probs, preds


def base_model_head(x_nchw, weight, bias, *, tb: int = 512, tk: int = 2048):
    """x_nchw: [B, C, H, W]; weight: [D, N]; bias: [N].

    Returns (logits [B,N] f32, probs [B,N] f32, preds [B] int32).
    """
    w_p, b_p = prepare_head_params(weight, bias, tk=tk)
    return _head_call(x_nchw, w_p, b_p, num_classes=int(weight.shape[1]),
                      tb=tb, tk=tk)


if __name__ == "__main__":
    # Small shapes consistent with an NCHW image classifier.
    B, C, H, W = 2, 4, 16, 16
    num_classes = 10
    D = C * H * W

    key = jax.random.PRNGKey(0)
    kx, kw, kb = jax.random.split(key, 3)
    x = jax.random.normal(kx, (B, C, H, W), dtype=jnp.float32)
    # Deterministic parameter init (synthetic, no checkpoint load).
    weight = jax.random.normal(kw, (D, num_classes), dtype=jnp.float32) * (1.0 / D**0.5)
    bias = jax.random.normal(kb, (num_classes,), dtype=jnp.float32) * 0.01

    logits, probs, preds = base_model_head(x, weight, bias)
    jax.block_until_ready((logits, probs, preds))

    # Reference check in plain JAX, using the same bf16-quantized inputs the
    # kernel consumes (the kernel intentionally feeds the MXU bf16).
    xb = x.reshape(B, D).astype(jnp.bfloat16).astype(jnp.float32)
    wb = weight.astype(jnp.bfloat16).astype(jnp.float32)
    ref_logits = jnp.dot(xb, wb, precision=jax.lax.Precision.HIGHEST) + bias
    ref_probs = jax.nn.softmax(ref_logits, axis=1)
    ref_preds = jnp.argmax(ref_logits, axis=1)

    assert jnp.allclose(logits, ref_logits, atol=1e-3), "logits mismatch"
    assert jnp.allclose(probs, ref_probs, atol=5e-5), "probs mismatch"
    assert jnp.array_equal(preds, ref_preds), "preds mismatch"

    print("KERNEL_OK")
</pallas_src>

<mosaic_0001>
module attributes {stable_mosaic.version = 11 : i64} {
  func.func @_head_kernel(%arg0: i32, %arg1: i32, %arg2: memref<8x1024xbf16, #tpu.memory_space<vmem>>, %arg3: memref<1024x128xbf16, #tpu.memory_space<vmem>>, %arg4: memref<1x128xf32, #tpu.memory_space<vmem>>, %arg5: memref<8x128xf32, #tpu.memory_space<vmem>>, %arg6: memref<8x128xf32, #tpu.memory_space<vmem>>, %arg7: memref<8x128xi32, #tpu.memory_space<vmem>>, %arg8: memref<8x128xf32, #tpu.memory_space<vmem>>) attributes {dimension_semantics = [#tpu.dimension_semantics<parallel>, #tpu.dimension_semantics<arbitrary>], iteration_bounds = array<i64: 1, 1>, scalar_prefetch = 0 : i64, scratch_operands = 1 : i64, tpu.core_type = #tpu.core_type<tc>, window_params = [{transform_indices = @transform_0, window_bounds = array<i64: 8, 1024>}, {pipeline_mode = #tpu.pipeline_mode<synchronous>, transform_indices = @transform_1, window_bounds = array<i64: 1024, 128>}, {pipeline_mode = #tpu.pipeline_mode<synchronous>, transform_indices = @transform_2, window_bounds = array<i64: 1, 128>}, {transform_indices = @transform_3, window_bounds = array<i64: 8, 128>}, {transform_indices = @transform_4, window_bounds = array<i64: 8, 128>}, {transform_indices = @transform_5, window_bounds = array<i64: 8, 128>}]} {
    %c0_i32 = arith.constant 0 : i32
    %0 = arith.cmpi eq, %arg1, %c0_i32 : i32
    %1 = arith.extui %0 : i1 to i32
    %c0_i32_0 = arith.constant 0 : i32
    %2 = arith.cmpi ne, %1, %c0_i32_0 : i32
    scf.if %2 {
      %cst_9 = arith.constant 0.000000e+00 : f32
      %15 = vector.broadcast %cst_9 : f32 to vector<8x128xf32>
      %c0_10 = arith.constant 0 : index
      %c0_11 = arith.constant 0 : index
      %16 = vector.load %arg8[%c0_10, %c0_11] : memref<8x128xf32, #tpu.memory_space<vmem>>, vector<8x128xf32>
      tpu.vector_store %arg8[%c0_10, %c0_11], %15 {strides = array<i32>} : memref<8x128xf32, #tpu.memory_space<vmem>>, vector<8x128xf32>,
    } else {
    }
    %c1024_i32 = arith.constant 1024 : i32
    %3 = arith.muli %arg1, %c1024_i32 : i32
    %4 = tpu.assume_multiple %3, 128 : i32
    %5 = arith.index_cast %4 : i32 to index
    %c0 = arith.constant 0 : index
    %6 = vector.load %arg3[%5, %c0] : memref<1024x128xbf16, #tpu.memory_space<vmem>>, vector<1024x128xbf16>
    %c0_1 = arith.constant 0 : index
    %c0_2 = arith.constant 0 : index
    %7 = vector.load %arg8[%c0_1, %c0_2] : memref<8x128xf32, #tpu.memory_space<vmem>>, vector<8x128xf32>
    %c0_3 = arith.constant 0 : index
    %c0_4 = arith.constant 0 : index
    %8 = vector.load %arg2[%c0_3, %c0_4] : memref<8x1024xbf16, #tpu.memory_space<vmem>>, vector<8x1024xbf16>
    %cst = arith.constant dense<0.000000e+00> : vector<8x128xf32>
    %9 = tpu.matmul %8, %6, %cst {dimension_numbers = #tpu.dot_dimension_numbers<[1], [0], [0], [1], [0, 0, 1, 1], [], []>} : vector<8x1024xbf16>, vector<1024x128xbf16>, vector<8x128xf32> -> vector<8x128xf32>
    %10 = arith.addf %7, %9 : vector<8x128xf32>
    %c0_5 = arith.constant 0 : index
    %c0_6 = arith.constant 0 : index
    %11 = vector.load %arg8[%c0_5, %c0_6] : memref<8x128xf32, #tpu.memory_space<vmem>>, vector<8x128xf32>
    tpu.vector_store %arg8[%c0_5, %c0_6], %10 {strides = array<i32>} : memref<8x128xf32, #tpu.memory_space<vmem>>, vector<8x128xf32>,
    %c0_i32_7 = arith.constant 0 : i32
    %12 = arith.cmpi eq, %arg1, %c0_i32_7 : i32
    %13 = arith.extui %12 : i1 to i32
    %c0_i32_8 = arith.constant 0 : i32
    %14 = arith.cmpi ne, %13, %c0_i32_8 : i32
    scf.if %14 {
      %c0_9 = arith.constant 0 : index
      %c0_10 = arith.constant 0 : index
      %15 = vector.load %arg8[%c0_9, %c0_10] : memref<8x128xf32, #tpu.memory_space<vmem>>, vector<8x128xf32>
      %c0_11 = arith.constant 0 : index
      %c0_12 = arith.constant 0 : index
      %16 = vector.load %arg4[%c0_11, %c0_12] : memref<1x128xf32, #tpu.memory_space<vmem>>, vector<1x128xf32>
      %17 = vector.broadcast %16 : vector<1x128xf32> to vector<8x128xf32>
      %18 = arith.addf %15, %17 : vector<8x128xf32>
      %19 = tpu.iota {dimensions = array<i32: 1>} : vector<8x128xi32>
      %c10_i32 = arith.constant 10 : i32
      %20 = vector.broadcast %c10_i32 : i32 to vector<8x128xi32>
      %21 = arith.cmpi slt, %19, %20 : vector<8x128xi32>
      %cst_13 = arith.constant 0xFF800000 : f32
      %22 = vector.broadcast %cst_13 : f32 to vector<8x128xf32>
      %23 = arith.select %21, %18, %22 : vector<8x128xi1>, vector<8x128xf32>
      %c0_14 = arith.constant 0 : index
      %c0_15 = arith.constant 0 : index
      %24 = vector.load %arg5[%c0_14, %c0_15] : memref<8x128xf32, #tpu.memory_space<vmem>>, vector<8x128xf32>
      tpu.vector_store %arg5[%c0_14, %c0_15], %23 {strides = array<i32>} : memref<8x128xf32, #tpu.memory_space<vmem>>, vector<8x128xf32>,
      %cst_16 = arith.constant dense<0xFF800000> : vector<8xf32>
      %25 = vector.multi_reduction <maximumf>, %23, %cst_16 [1] : vector<8x128xf32> to vector<8xf32>
      %26 = vector.shape_cast %25 : vector<8xf32> to vector<8x1xf32>
      %27 = vector.broadcast %26 : vector<8x1xf32> to vector<8x128xf32>
      %28 = arith.subf %23, %27 : vector<8x128xf32>
      %29 = math.exp %28 : vector<8x128xf32>
      %cst_17 = arith.constant 0.000000e+00 : f32
      %30 = vector.broadcast %cst_17 : f32 to vector<8x128xf32>
      %31 = arith.select %21, %29, %30 : vector<8x128xi1>, vector<8x128xf32>
      %cst_18 = arith.constant dense<0.000000e+00> : vector<8xf32>
      %32 = vector.multi_reduction <add>, %31, %cst_18 [1] : vector<8x128xf32> to vector<8xf32>
      %33 = vector.shape_cast %32 : vector<8xf32> to vector<8x1xf32>
      %34 = vector.broadcast %33 : vector<8x1xf32> to vector<8x128xf32>
      %35 = arith.divf %31, %34 : vector<8x128xf32>
      %c0_19 = arith.constant 0 : index
      %c0_20 = arith.constant 0 : index
      %36 = vector.load %arg6[%c0_19, %c0_20] : memref<8x128xf32, #tpu.memory_space<vmem>>, vector<8x128xf32>
      tpu.vector_store %arg6[%c0_19, %c0_20], %35 {strides = array<i32>} : memref<8x128xf32, #tpu.memory_space<vmem>>, vector<8x128xf32>,
      %37 = vector.broadcast %26 : vector<8x1xf32> to vector<8x128xf32>
      %38 = arith.cmpf oeq, %23, %37 : vector<8x128xf32>
      %c128_i32 = arith.constant 128 : i32
      %39 = vector.broadcast %c128_i32 : i32 to vector<8x128xi32>
      %40 = arith.select %38, %19, %39 : vector<8x128xi1>, vector<8x128xi32>
      %cst_21 = arith.constant dense<2147483647> : vector<8xi32>
      %41 = vector.multi_reduction <minsi>, %40, %cst_21 [1] : vector<8x128xi32> to vector<8xi32>
      %42 = vector.shape_cast %41 : vector<8xi32> to vector<8x1xi32>
      %43 = vector.shape_cast %42 : vector<8x1xi32> to vector<8x1xi32>
      %44 = vector.broadcast %43 : vector<8x1xi32> to vector<8x128xi32>
      %c0_22 = arith.constant 0 : index
      %c0_23 = arith.constant 0 : index
      %45 = vector.load %arg7[%c0_22, %c0_23] : memref<8x128xi32, #tpu.memory_space<vmem>>, vector<8x128xi32>
      tpu.vector_store %arg7[%c0_22, %c0_23], %44 {strides = array<i32>} : memref<8x128xi32, #tpu.memory_space<vmem>>, vector<8x128xi32>,
    } else {
    }
    return
  }
  func.func @transform_0(%arg0: i32, %arg1: i32) -> (i32, i32) {
    %c0_i32 = arith.constant 0 : i32
    return %arg0, %arg1 : i32, i32
  }
  func.func @transform_1(%arg0: i32, %arg1: i32) -> (i32, i32) {
    %c0_i32 = arith.constant 0 : i32
    %c0_i32_0 = arith.constant 0 : i32
    %c0_i32_1 = arith.constant 0 : i32
    return %c0_i32, %c0_i32_0 : i32, i32
  }
  func.func @transform_2(%arg0: i32, %arg1: i32) -> (i32, i32) {
    %c0_i32 = arith.constant 0 : i32
    %c0_i32_0 = arith.constant 0 : i32
    %c0_i32_1 = arith.constant 0 : i32
    return %c0_i32, %c0_i32_0 : i32, i32
  }
  func.func @transform_3(%arg0: i32, %arg1: i32) -> (i32, i32) {
    %c0_i32 = arith.constant 0 : i32
    %c0_i32_0 = arith.constant 0 : i32
    return %arg0, %c0_i32 : i32, i32
  }
  func.func @transform_4(%arg0: i32, %arg1: i32) -> (i32, i32) {
    %c0_i32 = arith.constant 0 : i32
    %c0_i32_0 = arith.constant 0 : i32
    return %arg0, %c0_i32 : i32, i32
  }
  func.func @transform_5(%arg0: i32, %arg1: i32) -> (i32, i32) {
    %c0_i32 = arith.constant 0 : i32
    %c0_i32_0 = arith.constant 0 : i32
    return %arg0, %c0_i32 : i32, i32
  }
}

</mosaic_0001>

<llo_original>
// kernel: _head_call.1
$region0: #{_head_call.1}
  #allocation0 [shape = 'u32[]', space=smem, size = 0x4, offset = 0x4, fixed_abs, tag = 'smem constant byte address 0x4 - core index']
  #allocation1 [shape = 'u32[144,128]{1,0:T(1,128)}', space=vmem, size = 0x12000, scoped, tag = 'internal scratch']
  #allocation2 [shape = 'f32[8,128]{1,0:T(8,128)}', space=vmem, size = 0x1000, scoped, tag = 'scratch operand']
  %s0 = inlined_call_operand.vmem [shape: bf16[8,1024], index: 0, kind: input, shape index: {}]
  %s1 = inlined_call_operand.hbm [shape: bf16[1024,128], index: 1, kind: input, shape index: {}]
  %s2 = inlined_call_operand.vmem [shape: f32[1,128], index: 2, kind: input, shape index: {}]
  %s3 = inlined_call_operand.vmem [shape: f32[8,128], index: 3, kind: output, shape index: {0}]
  %s4 = inlined_call_operand.vmem [shape: f32[8,128], index: 4, kind: output, shape index: {1}]
  %s5 = inlined_call_operand.vmem [shape: s32[8,128], index: 5, kind: output, shape index: {2}]
  %6 = xla_tuple %s3, %s4, %s5
  %s7 = sld [smem:[#allocation0]]
  $region50: #{_head_call.1} parent=0
    _
  %s9 = ssub.s32 1, %s7
  %s10 = scalar_select 0, %s9, %s7
  $region1: #{_head_call.1} parent=0
    #allocation3 [shape = 'u8[262144]{0}', space=vmem, size = 0x40000, scoped, tag = 'input window, operand 1, single buffered']
    #allocation4 [shape = 's32[1]{0}', space=sflag, size = 0x4, scoped, tag = 'scoped memory for _head_call.1']
    %11 = vsyncpa [#allocation4], 0
    // Predicated region
    $region2: #{_head_call.1} parent=1 // pred_check
      _
    $region3: #{_head_call.1} parent=1 // pred_check_branch
      %13 = sbr.rel (0) target = $region5
    $region4: #{_head_call.1} parent=1 // pred_region
      _
    $region5: #{_head_call.1} parent=1 // pred_fallthru
      _
    // Predicated region
    $region6: #{_head_call.1} parent=1 // pred_check
      _
    $region7: #{_head_call.1} parent=1 // pred_check_branch
      %15 = sbr.rel (0) target = $region9
    $region8: #{_head_call.1} parent=1 // pred_region
      %s17 = ssub.s32 8192, 8192
      %18 = vsyncadd [#allocation4], %s17
      %s19 = sshll.u32 [#allocation3], 4
      %s20 = int_to_ptr.vmem [resolvable:$true] %s19
      %25 = dma.hbm_to_vmem [thread:$0]  %s1, 8192, %s20, [#allocation4], 64, 64, 4
    $region9: #{_head_call.1} parent=1 // pred_fallthru
      _
    // Predicated region
    $region10: #{_head_call.1} parent=1 // pred_check
      _
    $region11: #{_head_call.1} parent=1 // pred_check_branch
      %27 = sbr.rel (0) target = $region13
    $region12: #{_head_call.1} parent=1 // pred_region
      _
    $region13: #{_head_call.1} parent=1 // pred_fallthru
      _
    // Predicated region
    $region14: #{_head_call.1} parent=1 // pred_check
      _
    $region15: #{_head_call.1} parent=1 // pred_check_branch
      %29 = sbr.rel (0) target = $region17
    $region16: #{_head_call.1} parent=1 // pred_region
      %30 = dma.done [#allocation4], 8192
    $region17: #{_head_call.1} parent=1 // pred_fallthru
      _
    %p32 = scmp.eq.s32.totalorder 0, 0
    // Predicated region
    $region18: #{_head_call.1} parent=1 // pred_check
      %p33 = pneg %p32
    $region19: #{_head_call.1} parent=1 // pred_check_branch
      %35 = sbr.rel (%p33) target = $region21
    $region20: #{_head_call.1} parent=1 // pred_region
      %36 = vst [vmem:[#allocation2] sm:$0xff] 0.0
    $region21: #{_head_call.1} parent=1 // pred_fallthru
      _
    %s37 = smul.u32 0, 1024
    %s38 = sshra.s32 %s37, 3
    %s39 = sand.u32 %s37, 7
    %s40 = smul.addr %s38, 4
    %s41 = scalar_lea.vmem [#allocation3], %s40
    %v42 = vld [vmem:[%s41] sm:$0xf]
    %v43 = vld [vmem:[%s41 + $0x4] sm:$0xf]
    %v44 = vld [vmem:[%s41 + $0x8] sm:$0xf]
    %v45 = vld [vmem:[%s41 + $0xc] sm:$0xf]
    %v46 = vld [vmem:[%s41 + $0x10] sm:$0xf]
    %v47 = vld [vmem:[%s41 + $0x14] sm:$0xf]
    %v48 = vld [vmem:[%s41 + $0x18] sm:$0xf]
    %v49 = vld [vmem:[%s41 + $0x1c] sm:$0xf]
    %v50 = vld [vmem:[%s41 + $0x20] sm:$0xf]
    %v51 = vld [vmem:[%s41 + $0x24] sm:$0xf]
    %v52 = vld [vmem:[%s41 + $0x28] sm:$0xf]
    %v53 = vld [vmem:[%s41 + $0x2c] sm:$0xf]
    %v54 = vld [vmem:[%s41 + $0x30] sm:$0xf]
    %v55 = vld [vmem:[%s41 + $0x34] sm:$0xf]
    %v56 = vld [vmem:[%s41 + $0x38] sm:$0xf]
    %v57 = vld [vmem:[%s41 + $0x3c] sm:$0xf]
    %v58 = vld [vmem:[%s41 + $0x40] sm:$0xf]
    %v59 = vld [vmem:[%s41 + $0x44] sm:$0xf]
    %v60 = vld [vmem:[%s41 + $0x48] sm:$0xf]
    %v61 = vld [vmem:[%s41 + $0x4c] sm:$0xf]
    %v62 = vld [vmem:[%s41 + $0x50] sm:$0xf]
    %v63 = vld [vmem:[%s41 + $0x54] sm:$0xf]
    %v64 = vld [vmem:[%s41 + $0x58] sm:$0xf]
    %v65 = vld [vmem:[%s41 + $0x5c] sm:$0xf]
    %v66 = vld [vmem:[%s41 + $0x60] sm:$0xf]
    %v67 = vld [vmem:[%s41 + $0x64] sm:$0xf]
    %v68 = vld [vmem:[%s41 + $0x68] sm:$0xf]
    %v69 = vld [vmem:[%s41 + $0x6c] sm:$0xf]
    %v70 = vld [vmem:[%s41 + $0x70] sm:$0xf]
    %v71 = vld [vmem:[%s41 + $0x74] sm:$0xf]
    %v72 = vld [vmem:[%s41 + $0x78] sm:$0xf]
    %v73 = vld [vmem:[%s41 + $0x7c] sm:$0xf]
    %v74 = vld [vmem:[%s41 + $0x80] sm:$0xf]
    %v75 = vld [vmem:[%s41 + $0x84] sm:$0xf]
    %v76 = vld [vmem:[%s41 + $0x88] sm:$0xf]
    %v77 = vld [vmem:[%s41 + $0x8c] sm:$0xf]
    %v78 = vld [vmem:[%s41 + $0x90] sm:$0xf]
    %v79 = vld [vmem:[%s41 + $0x94] sm:$0xf]
    %v80 = vld [vmem:[%s41 + $0x98] sm:$0xf]
    %v81 = vld [vmem:[%s41 + $0x9c] sm:$0xf]
    %v82 = vld [vmem:[%s41 + $0xa0] sm:$0xf]
    %v83 = vld [vmem:[%s41 + $0xa4] sm:$0xf]
    %v84 = vld [vmem:[%s41 + $0xa8] sm:$0xf]
    %v85 = vld [vmem:[%s41 + $0xac] sm:$0xf]
    %v86 = vld [vmem:[%s41 + $0xb0] sm:$0xf]
    %v87 = vld [vmem:[%s41 + $0xb4] sm:$0xf]
    %v88 = vld [vmem:[%s41 + $0xb8] sm:$0xf]
    %v89 = vld [vmem:[%s41 + $0xbc] sm:$0xf]
    %v90 = vld [vmem:[%s41 + $0xc0] sm:$0xf]
    %v91 = vld [vmem:[%s41 + $0xc4] sm:$0xf]
    %v92 = vld [vmem:[%s41 + $0xc8] sm:$0xf]
    %v93 = vld [vmem:[%s41 + $0xcc] sm:$0xf]
    %v94 = vld [vmem:[%s41 + $0xd0] sm:$0xf]
    %v95 = vld [vmem:[%s41 + $0xd4] sm:$0xf]
    %v96 = vld [vmem:[%s41 + $0xd8] sm:$0xf]
    %v97 = vld [vmem:[%s41 + $0xdc] sm:$0xf]
    %v98 = vld [vmem:[%s41 + $0xe0] sm:$0xf]
    %v99 = vld [vmem:[%s41 + $0xe4] sm:$0xf]
    %v100 = vld [vmem:[%s41 + $0xe8] sm:$0xf]
    %v101 = vld [vmem:[%s41 + $0xec] sm:$0xf]
    %v102 = vld [vmem:[%s41 + $0xf0] sm:$0xf]
    %v103 = vld [vmem:[%s41 + $0xf4] sm:$0xf]
    %v104 = vld [vmem:[%s41 + $0xf8] sm:$0xf]
    %v105 = vld [vmem:[%s41 + $0xfc] sm:$0xf]
    %v106 = vld [vmem:[%s41 + $0x100] sm:$0xf]
    %v107 = vld [vmem:[%s41 + $0x104] sm:$0xf]
    %v108 = vld [vmem:[%s41 + $0x108] sm:$0xf]
    %v109 = vld [vmem:[%s41 + $0x10c] sm:$0xf]
    %v110 = vld [vmem:[%s41 + $0x110] sm:$0xf]
    %v111 = vld [vmem:[%s41 + $0x114] sm:$0xf]
    %v112 = vld [vmem:[%s41 + $0x118] sm:$0xf]
    %v113 = vld [vmem:[%s41 + $0x11c] sm:$0xf]
    %v114 = vld [vmem:[%s41 + $0x120] sm:$0xf]
    %v115 = vld [vmem:[%s41 + $0x124] sm:$0xf]
    %v116 = vld [vmem:[%s41 + $0x128] sm:$0xf]
    %v117 = vld [vmem:[%s41 + $0x12c] sm:$0xf]
    %v118 = vld [vmem:[%s41 + $0x130] sm:$0xf]
    %v119 = vld [vmem:[%s41 + $0x134] sm:$0xf]
    %v120 = vld [vmem:[%s41 + $0x138] sm:$0xf]
    %v121 = vld [vmem:[%s41 + $0x13c] sm:$0xf]
    %v122 = vld [vmem:[%s41 + $0x140] sm:$0xf]
    %v123 = vld [vmem:[%s41 + $0x144] sm:$0xf]
    %v124 = vld [vmem:[%s41 + $0x148] sm:$0xf]
    %v125 = vld [vmem:[%s41 + $0x14c] sm:$0xf]
    %v126 = vld [vmem:[%s41 + $0x150] sm:$0xf]
    %v127 = vld [vmem:[%s41 + $0x154] sm:$0xf]
    %v128 = vld [vmem:[%s41 + $0x158] sm:$0xf]
    %v129 = vld [vmem:[%s41 + $0x15c] sm:$0xf]
    %v130 = vld [vmem:[%s41 + $0x160] sm:$0xf]
    %v131 = vld [vmem:[%s41 + $0x164] sm:$0xf]
    %v132 = vld [vmem:[%s41 + $0x168] sm:$0xf]
    %v133 = vld [vmem:[%s41 + $0x16c] sm:$0xf]
    %v134 = vld [vmem:[%s41 + $0x170] sm:$0xf]
    %v135 = vld [vmem:[%s41 + $0x174] sm:$0xf]
    %v136 = vld [vmem:[%s41 + $0x178] sm:$0xf]
    %v137 = vld [vmem:[%s41 + $0x17c] sm:$0xf]
    %v138 = vld [vmem:[%s41 + $0x180] sm:$0xf]
    %v139 = vld [vmem:[%s41 + $0x184] sm:$0xf]
    %v140 = vld [vmem:[%s41 + $0x188] sm:$0xf]
    %v141 = vld [vmem:[%s41 + $0x18c] sm:$0xf]
    %v142 = vld [vmem:[%s41 + $0x190] sm:$0xf]
    %v143 = vld [vmem:[%s41 + $0x194] sm:$0xf]
    %v144 = vld [vmem:[%s41 + $0x198] sm:$0xf]
    %v145 = vld [vmem:[%s41 + $0x19c] sm:$0xf]
    %v146 = vld [vmem:[%s41 + $0x1a0] sm:$0xf]
    %v147 = vld [vmem:[%s41 + $0x1a4] sm:$0xf]
    %v148 = vld [vmem:[%s41 + $0x1a8] sm:$0xf]
    %v149 = vld [vmem:[%s41 + $0x1ac] sm:$0xf]
    %v150 = vld [vmem:[%s41 + $0x1b0] sm:$0xf]
    %v151 = vld [vmem:[%s41 + $0x1b4] sm:$0xf]
    %v152 = vld [vmem:[%s41 + $0x1b8] sm:$0xf]
    %v153 = vld [vmem:[%s41 + $0x1bc] sm:$0xf]
    %v154 = vld [vmem:[%s41 + $0x1c0] sm:$0xf]
    %v155 = vld [vmem:[%s41 + $0x1c4] sm:$0xf]
    %v156 = vld [vmem:[%s41 + $0x1c8] sm:$0xf]
    %v157 = vld [vmem:[%s41 + $0x1cc] sm:$0xf]
    %v158 = vld [vmem:[%s41 + $0x1d0] sm:$0xf]
    %v159 = vld [vmem:[%s41 + $0x1d4] sm:$0xf]
    %v160 = vld [vmem:[%s41 + $0x1d8] sm:$0xf]
    %v161 = vld [vmem:[%s41 + $0x1dc] sm:$0xf]
    %v162 = vld [vmem:[%s41 + $0x1e0] sm:$0xf]
    %v163 = vld [vmem:[%s41 + $0x1e4] sm:$0xf]
    %v164 = vld [vmem:[%s41 + $0x1e8] sm:$0xf]
    %v165 = vld [vmem:[%s41 + $0x1ec] sm:$0xf]
    %v166 = vld [vmem:[%s41 + $0x1f0] sm:$0xf]
    %v167 = vld [vmem:[%s41 + $0x1f4] sm:$0xf]
    %v168 = vld [vmem:[%s41 + $0x1f8] sm:$0xf]
    %v169 = vld [vmem:[%s41 + $0x1fc] sm:$0xf]
    %v170 = vld [vmem:[#allocation2] sm:$0xff]
    %v171 = vld [vmem:[%s0] sm:$0xff]
    %v172 = vld [vmem:[%s0 + $0x8] sm:$0xff]
    %v173 = vld [vmem:[%s0 + $0x10] sm:$0xff]
    %v174 = vld [vmem:[%s0 + $0x18] sm:$0xff]
    %v179 = vunpack.c.l.b16 %v171
    %v180 = vunpack.c.h.b16 %v171
    %v181 = vunpack.c.l.b16 %v172
    %v182 = vunpack.c.h.b16 %v172
    %v183 = vunpack.c.l.b16 %v173
    %v184 = vunpack.c.h.b16 %v173
    %v185 = vunpack.c.l.b16 %v174
    %v186 = vunpack.c.h.b16 %v174
    %v187 = vpack.c.b16 %v179, %v179
    %v188 = vpack.c.b16 %v180, %v180
    %v189 = vpack.c.b16 %v181, %v181
    %v190 = vpack.c.b16 %v182, %v182
    %v191 = vpack.c.b16 %v183, %v183
    %v192 = vpack.c.b16 %v184, %v184
    %v193 = vpack.c.b16 %v185, %v185
    %v194 = vpack.c.b16 %v186, %v186
    %v331 = vunpack.c.l.b16 %v42
    %v332 = vunpack.c.l.b16 %v43
    %v333 = vunpack.c.l.b16 %v44
    %v334 = vunpack.c.l.b16 %v45
    %v335 = vunpack.c.l.b16 %v46
    %v336 = vunpack.c.l.b16 %v47
    %v337 = vunpack.c.l.b16 %v48
    %v338 = vunpack.c.l.b16 %v49
    %v339 = vunpack.c.l.b16 %v50
    %v340 = vunpack.c.l.b16 %v51
    %v341 = vunpack.c.l.b16 %v52
    %v342 = vunpack.c.l.b16 %v53
    %v343 = vunpack.c.l.b16 %v54
    %v344 = vunpack.c.l.b16 %v55
    %v345 = vunpack.c.l.b16 %v56
    %v346 = vunpack.c.l.b16 %v57
    %v347 = vunpack.c.l.b16 %v58
    %v348 = vunpack.c.l.b16 %v59
    %v349 = vunpack.c.l.b16 %v60
    %v350 = vunpack.c.l.b16 %v61
    %v351 = vunpack.c.l.b16 %v62
    %v352 = vunpack.c.l.b16 %v63
    %v353 = vunpack.c.l.b16 %v64
    %v354 = vunpack.c.l.b16 %v65
    %v355 = vunpack.c.l.b16 %v66
    %v356 = vunpack.c.l.b16 %v67
    %v357 = vunpack.c.l.b16 %v68
    %v358 = vunpack.c.l.b16 %v69
    %v359 = vunpack.c.l.b16 %v70
    %v360 = vunpack.c.l.b16 %v71
    %v361 = vunpack.c.l.b16 %v72
    %v362 = vunpack.c.l.b16 %v73
    %v363 = vunpack.c.l.b16 %v74
    %v364 = vunpack.c.l.b16 %v75
    %v365 = vunpack.c.l.b16 %v76
    %v366 = vunpack.c.l.b16 %v77
    %v367 = vunpack.c.l.b16 %v78
    %v368 = vunpack.c.l.b16 %v79
    %v369 = vunpack.c.l.b16 %v80
    %v370 = vunpack.c.l.b16 %v81
    %v371 = vunpack.c.l.b16 %v82
    %v372 = vunpack.c.l.b16 %v83
    %v373 = vunpack.c.l.b16 %v84
    %v374 = vunpack.c.l.b16 %v85
    %v375 = vunpack.c.l.b16 %v86
    %v376 = vunpack.c.l.b16 %v87
    %v377 = vunpack.c.l.b16 %v88
    %v378 = vunpack.c.l.b16 %v89
    %v379 = vunpack.c.l.b16 %v90
    %v380 = vunpack.c.l.b16 %v91
    %v381 = vunpack.c.l.b16 %v92
    %v382 = vunpack.c.l.b16 %v93
    %v383 = vunpack.c.l.b16 %v94
    %v384 = vunpack.c.l.b16 %v95
    %v385 = vunpack.c.l.b16 %v96
    %v386 = vunpack.c.l.b16 %v97
    %v387 = vunpack.c.l.b16 %v98
    %v388 = vunpack.c.l.b16 %v99
    %v389 = vunpack.c.l.b16 %v100
    %v390 = vunpack.c.l.b16 %v101
    %v391 = vunpack.c.l.b16 %v102
    %v392 = vunpack.c.l.b16 %v103
    %v393 = vunpack.c.l.b16 %v104
    %v394 = vunpack.c.l.b16 %v105
    %v395 = vunpack.c.l.b16 %v106
    %v396 = vunpack.c.l.b16 %v107
    %v397 = vunpack.c.l.b16 %v108
    %v398 = vunpack.c.l.b16 %v109
    %v399 = vunpack.c.l.b16 %v110
    %v400 = vunpack.c.l.b16 %v111
    %v401 = vunpack.c.l.b16 %v112
    %v402 = vunpack.c.l.b16 %v113
    %v403 = vunpack.c.l.b16 %v114
    %v404 = vunpack.c.l.b16 %v115
    %v405 = vunpack.c.l.b16 %v116
    %v406 = vunpack.c.l.b16 %v117
    %v407 = vunpack.c.l.b16 %v118
    %v408 = vunpack.c.l.b16 %v119
    %v409 = vunpack.c.l.b16 %v120
    %v410 = vunpack.c.l.b16 %v121
    %v411 = vunpack.c.l.b16 %v122
    %v412 = vunpack.c.l.b16 %v123
    %v413 = vunpack.c.l.b16 %v124
    %v414 = vunpack.c.l.b16 %v125
    %v415 = vunpack.c.l.b16 %v126
    %v416 = vunpack.c.l.b16 %v127
    %v417 = vunpack.c.l.b16 %v128
    %v418 = vunpack.c.l.b16 %v129
    %v419 = vunpack.c.l.b16 %v130
    %v420 = vunpack.c.l.b16 %v131
    %v421 = vunpack.c.l.b16 %v132
    %v422 = vunpack.c.l.b16 %v133
    %v423 = vunpack.c.l.b16 %v134
    %v424 = vunpack.c.l.b16 %v135
    %v425 = vunpack.c.l.b16 %v136
    %v426 = vunpack.c.l.b16 %v137
    %v427 = vunpack.c.l.b16 %v138
    %v428 = vunpack.c.l.b16 %v139
    %v429 = vunpack.c.l.b16 %v140
    %v430 = vunpack.c.l.b16 %v141
    %v431 = vunpack.c.l.b16 %v142
    %v432 = vunpack.c.l.b16 %v143
    %v433 = vunpack.c.l.b16 %v144
    %v434 = vunpack.c.l.b16 %v145
    %v435 = vunpack.c.l.b16 %v146
    %v436 = vunpack.c.l.b16 %v147
    %v437 = vunpack.c.l.b16 %v148
    %v438 = vunpack.c.l.b16 %v149
    %v439 = vunpack.c.l.b16 %v150
    %v440 = vunpack.c.l.b16 %v151
    %v441 = vunpack.c.l.b16 %v152
    %v442 = vunpack.c.l.b16 %v153
    %v443 = vunpack.c.l.b16 %v154
    %v444 = vunpack.c.l.b16 %v155
    %v445 = vunpack.c.l.b16 %v156
    %v446 = vunpack.c.l.b16 %v157
    %v447 = vunpack.c.l.b16 %v158
    %v448 = vunpack.c.l.b16 %v159
    %v449 = vunpack.c.l.b16 %v160
    %v450 = vunpack.c.l.b16 %v161
    %v451 = vunpack.c.l.b16 %v162
    %v452 = vunpack.c.l.b16 %v163
    %v453 = vunpack.c.l.b16 %v164
    %v454 = vunpack.c.l.b16 %v165
    %v455 = vunpack.c.l.b16 %v166
    %v456 = vunpack.c.l.b16 %v167
    %v457 = vunpack.c.l.b16 %v168
    %v458 = vunpack.c.l.b16 %v169
    %v459 = vpack.c.b16 %v332, %v331
    %v460 = vpack.c.b16 %v334, %v333
    %v461 = vpack.c.b16 %v336, %v335
    %v462 = vpack.c.b16 %v338, %v337
    %v463 = vpack.c.b16 %v340, %v339
    %v464 = vpack.c.b16 %v342, %v341
    %v465 = vpack.c.b16 %v344, %v343
    %v466 = vpack.c.b16 %v346, %v345
    %v467 = vpack.c.b16 %v348, %v347
    %v468 = vpack.c.b16 %v350, %v349
    %v469 = vpack.c.b16 %v352, %v351
    %v470 = vpack.c.b16 %v354, %v353
    %v471 = vpack.c.b16 %v356, %v355
    %v472 = vpack.c.b16 %v358, %v357
    %v473 = vpack.c.b16 %v360, %v359
    %v474 = vpack.c.b16 %v362, %v361
    %v475 = vpack.c.b16 %v364, %v363
    %v476 = vpack.c.b16 %v366, %v365
    %v477 = vpack.c.b16 %v368, %v367
    %v478 = vpack.c.b16 %v370, %v369
    %v479 = vpack.c.b16 %v372, %v371
    %v480 = vpack.c.b16 %v374, %v373
    %v481 = vpack.c.b16 %v376, %v375
    %v482 = vpack.c.b16 %v378, %v377
    %v483 = vpack.c.b16 %v380, %v379
    %v484 = vpack.c.b16 %v382, %v381
    %v485 = vpack.c.b16 %v384, %v383
    %v486 = vpack.c.b16 %v386, %v385
    %v487 = vpack.c.b16 %v388, %v387
    %v488 = vpack.c.b16 %v390, %v389
    %v489 = vpack.c.b16 %v392, %v391
    %v490 = vpack.c.b16 %v394, %v393
    %v491 = vpack.c.b16 %v396, %v395
    %v492 = vpack.c.b16 %v398, %v397
    %v493 = vpack.c.b16 %v400, %v399
    %v494 = vpack.c.b16 %v402, %v401
    %v495 = vpack.c.b16 %v404, %v403
    %v496 = vpack.c.b16 %v406, %v405
    %v497 = vpack.c.b16 %v408, %v407
    %v498 = vpack.c.b16 %v410, %v409
    %v499 = vpack.c.b16 %v412, %v411
    %v500 = vpack.c.b16 %v414, %v413
    %v501 = vpack.c.b16 %v416, %v415
    %v502 = vpack.c.b16 %v418, %v417
    %v503 = vpack.c.b16 %v420, %v419
    %v504 = vpack.c.b16 %v422, %v421
    %v505 = vpack.c.b16 %v424, %v423
    %v506 = vpack.c.b16 %v426, %v425
    %v507 = vpack.c.b16 %v428, %v427
    %v508 = vpack.c.b16 %v430, %v429
    %v509 = vpack.c.b16 %v432, %v431
    %v510 = vpack.c.b16 %v434, %v433
    %v511 = vpack.c.b16 %v436, %v435
    %v512 = vpack.c.b16 %v438, %v437
    %v513 = vpack.c.b16 %v440, %v439
    %v514 = vpack.c.b16 %v442, %v441
    %v515 = vpack.c.b16 %v444, %v443
    %v516 = vpack.c.b16 %v446, %v445
    %v517 = vpack.c.b16 %v448, %v447
    %v518 = vpack.c.b16 %v450, %v449
    %v519 = vpack.c.b16 %v452, %v451
    %v520 = vpack.c.b16 %v454, %v453
    %v521 = vpack.c.b16 %v456, %v455
    %v522 = vpack.c.b16 %v458, %v457
    %587 = vmatprep.subr.bf16.mxu0 0
    %588 = vmatpush1.bf16.msra.mxu0 %v459
    %589 = vmatprep.subr.bf16.mxu0 0
    %590 = vmatpush1.bf16.msra.mxu0 %v460
    %591 = vmatprep.subr.bf16.mxu0 0
    %592 = vmatpush1.bf16.msra.mxu0 %v461
    %593 = vmatprep.subr.bf16.mxu0 0
    %594 = vmatpush1.bf16.msra.mxu0 %v462
    %595 = vmatprep.subr.bf16.mxu0 0
    %596 = vmatpush1.bf16.msra.mxu0 %v463
    %597 = vmatprep.subr.bf16.mxu0 0
    %598 = vmatpush1.bf16.msra.mxu0 %v464
    %599 = vmatprep.subr.bf16.mxu0 0
    %600 = vmatpush1.bf16.msra.mxu0 %v465
    %601 = vmatprep.subr.bf16.mxu0 0
    %602 = vmatpush1.bf16.msra.mxu0 %v466
    %603 = vmatprep.subr.bf16.mxu0 0
    %604 = vmatpush1.bf16.msra.mxu0 %v467
    %605 = vmatprep.subr.bf16.mxu0 0
    %606 = vmatpush1.bf16.msra.mxu0 %v468
    %607 = vmatprep.subr.bf16.mxu0 0
    %608 = vmatpush1.bf16.msra.mxu0 %v469
    %609 = vmatprep.subr.bf16.mxu0 0
    %610 = vmatpush1.bf16.msra.mxu0 %v470
    %611 = vmatprep.subr.bf16.mxu0 0
    %612 = vmatpush1.bf16.msra.mxu0 %v471
    %613 = vmatprep.subr.bf16.mxu0 0
    %614 = vmatpush1.bf16.msra.mxu0 %v472
    %615 = vmatprep.subr.bf16.mxu0 0
    %616 = vmatpush1.bf16.msra.mxu0 %v473
    %617 = vmatprep.subr.bf16.mxu0 0
    %618 = vmatpush1.bf16.msra.mxu0 %v474
    %619 = vmatprep.mubr.bf16.mxu0 %v188
    %620 = vmatmul.mubr.bf16.gmra.mrb[0].mxu0 %v187
    %v621 = vpop.f32.mrb[0].mxu0
    %v622 = vadd.f32 0.0, %v621
    %v623 = vpop.f32.mrb[0].mxu0
    %v624 = vpop.f32.mrb[0].mxu0
    %v625 = vpop.f32.mrb[0].mxu0
    %626 = vdwg.mxu0
    %627 = vmatprep.subr.bf16.mxu0 0
    %628 = vmatpush1.bf16.msra.mxu0 %v475
    %629 = vmatprep.subr.bf16.mxu0 0
    %630 = vmatpush1.bf16.msra.mxu0 %v476
    %631 = vmatprep.subr.bf16.mxu0 0
    %632 = vmatpush1.bf16.msra.mxu0 %v477
    %633 = vmatprep.subr.bf16.mxu0 0
    %634 = vmatpush1.bf16.msra.mxu0 %v478
    %635 = vmatprep.subr.bf16.mxu0 0
    %636 = vmatpush1.bf16.msra.mxu0 %v479
    %637 = vmatprep.subr.bf16.mxu0 0
    %638 = vmatpush1.bf16.msra.mxu0 %v480
    %639 = vmatprep.subr.bf16.mxu0 0
    %640 = vmatpush1.bf16.msra.mxu0 %v481
    %641 = vmatprep.subr.bf16.mxu0 0
    %642 = vmatpush1.bf16.msra.mxu0 %v482
    %643 = vmatprep.subr.bf16.mxu0 0
    %644 = vmatpush1.bf16.msra.mxu0 %v483
    %645 = vmatprep.subr.bf16.mxu0 0
    %646 = vmatpush1.bf16.msra.mxu0 %v484
    %647 = vmatprep.subr.bf16.mxu0 0
    %648 = vmatpush1.bf16.msra.mxu0 %v485
    %649 = vmatprep.subr.bf16.mxu0 0
    %650 = vmatpush1.bf16.msra.mxu0 %v486
    %651 = vmatprep.subr.bf16.mxu0 0
    %652 = vmatpush1.bf16.msra.mxu0 %v487
    %653 = vmatprep.subr.bf16.mxu0 0
    %654 = vmatpush1.bf16.msra.mxu0 %v488
    %655 = vmatprep.subr.bf16.mxu0 0
    %656 = vmatpush1.bf16.msra.mxu0 %v489
    %657 = vmatprep.subr.bf16.mxu0 0
    %658 = vmatpush1.bf16.msra.mxu0 %v490
    %659 = vmatprep.mubr.bf16.mxu0 %v190
    %660 = vmatmul.mubr.bf16.gmra.mrb[0].mxu0 %v189
    %v661 = vpop.f32.mrb[0].mxu0
    %v662 = vadd.f32 %v622, %v661
    %v663 = vpop.f32.mrb[0].mxu0
    %v664 = vpop.f32.mrb[0].mxu0
    %v665 = vpop.f32.mrb[0].mxu0
    %666 = vdwg.mxu0
    %667 = vmatprep.subr.bf16.mxu0 0
    %668 = vmatpush1.bf16.msra.mxu0 %v491
    %669 = vmatprep.subr.bf16.mxu0 0
    %670 = vmatpush1.bf16.msra.mxu0 %v492
    %671 = vmatprep.subr.bf16.mxu0 0
    %672 = vmatpush1.bf16.msra.mxu0 %v493
    %673 = vmatprep.subr.bf16.mxu0 0
    %674 = vmatpush1.bf16.msra.mxu0 %v494
    %675 = vmatprep.subr.bf16.mxu0 0
    %676 = vmatpush1.bf16.msra.mxu0 %v495
    %677 = vmatprep.subr.bf16.mxu0 0
    %678 = vmatpush1.bf16.msra.mxu0 %v496
    %679 = vmatprep.subr.bf16.mxu0 0
    %680 = vmatpush1.bf16.msra.mxu0 %v497
    %681 = vmatprep.subr.bf16.mxu0 0
    %682 = vmatpush1.bf16.msra.mxu0 %v498
    %683 = vmatprep.subr.bf16.mxu0 0
    %684 = vmatpush1.bf16.msra.mxu0 %v499
    %685 = vmatprep.subr.bf16.mxu0 0
    %686 = vmatpush1.bf16.msra.mxu0 %v500
    %687 = vmatprep.subr.bf16.mxu0 0
    %688 = vmatpush1.bf16.msra.mxu0 %v501
    %689 = vmatprep.subr.bf16.mxu0 0
    %690 = vmatpush1.bf16.msra.mxu0 %v502
    %691 = vmatprep.subr.bf16.mxu0 0
    %692 = vmatpush1.bf16.msra.mxu0 %v503
    %693 = vmatprep.subr.bf16.mxu0 0
    %694 = vmatpush1.bf16.msra.mxu0 %v504
    %695 = vmatprep.subr.bf16.mxu0 0
    %696 = vmatpush1.bf16.msra.mxu0 %v505
    %697 = vmatprep.subr.bf16.mxu0 0
    %698 = vmatpush1.bf16.msra.mxu0 %v506
    %699 = vmatprep.mubr.bf16.mxu0 %v192
    %700 = vmatmul.mubr.bf16.gmra.mrb[0].mxu0 %v191
    %v701 = vpop.f32.mrb[0].mxu0
    %v702 = vadd.f32 %v662, %v701
    %v703 = vpop.f32.mrb[0].mxu0
    %v704 = vpop.f32.mrb[0].mxu0
    %v705 = vpop.f32.mrb[0].mxu0
    %706 = vdwg.mxu0
    %707 = vmatprep.subr.bf16.mxu0 0
    %708 = vmatpush1.bf16.msra.mxu0 %v507
    %709 = vmatprep.subr.bf16.mxu0 0
    %710 = vmatpush1.bf16.msra.mxu0 %v508
    %711 = vmatprep.subr.bf16.mxu0 0
    %712 = vmatpush1.bf16.msra.mxu0 %v509
    %713 = vmatprep.subr.bf16.mxu0 0
    %714 = vmatpush1.bf16.msra.mxu0 %v510
    %715 = vmatprep.subr.bf16.mxu0 0
    %716 = vmatpush1.bf16.msra.mxu0 %v511
    %717 = vmatprep.subr.bf16.mxu0 0
    %718 = vmatpush1.bf16.msra.mxu0 %v512
    %719 = vmatprep.subr.bf16.mxu0 0
    %720 = vmatpush1.bf16.msra.mxu0 %v513
    %721 = vmatprep.subr.bf16.mxu0 0
    %722 = vmatpush1.bf16.msra.mxu0 %v514
    %723 = vmatprep.subr.bf16.mxu0 0
    %724 = vmatpush1.bf16.msra.mxu0 %v515
    %725 = vmatprep.subr.bf16.mxu0 0
    %726 = vmatpush1.bf16.msra.mxu0 %v516
    %727 = vmatprep.subr.bf16.mxu0 0
    %728 = vmatpush1.bf16.msra.mxu0 %v517
    %729 = vmatprep.subr.bf16.mxu0 0
    %730 = vmatpush1.bf16.msra.mxu0 %v518
    %731 = vmatprep.subr.bf16.mxu0 0
    %732 = vmatpush1.bf16.msra.mxu0 %v519
    %733 = vmatprep.subr.bf16.mxu0 0
    %734 = vmatpush1.bf16.msra.mxu0 %v520
    %735 = vmatprep.subr.bf16.mxu0 0
    %736 = vmatpush1.bf16.msra.mxu0 %v521
    %737 = vmatprep.subr.bf16.mxu0 0
    %738 = vmatpush1.bf16.msra.mxu0 %v522
    %739 = vmatprep.mubr.bf16.mxu0 %v194
    %740 = vmatmul.mubr.bf16.gmra.mrb[0].mxu0 %v193
    %v741 = vpop.f32.mrb[0].mxu0
    %v742 = vadd.f32 %v702, %v741
    %v743 = vpop.f32.mrb[0].mxu0
    %v744 = vpop.f32.mrb[0].mxu0
    %v745 = vpop.f32.mrb[0].mxu0
    %746 = vdwg.mxu0
    %v747 = vadd.f32 %v170, %v742
    %748 = vst [vmem:[#allocation2] sm:$0xff] %v747
    // Predicated region
    $region22: #{_head_call.1} parent=1 // pred_check
      %p749 = pneg %p32
    $region23: #{_head_call.1} parent=1 // pred_check_branch
      %751 = sbr.rel (%p749) target = $region25
    $region24: #{_head_call.1} parent=1 // pred_region
      %v752 = vld [vmem:[#allocation2] sm:$0xff]
      %v753 = vld [vmem:[%s2] sm:$0x1]
      %v755 = vlaneseq
      %v756 = vshrl.u32 %v755, 7
      %v757 = vsub.s32 0, %v756
      %v758 = vrot.slane %v753, %v757
      %v760 = vadd.f32 %v752, %v758
      %v761 = vlaneseq
      %v762 = vand.u32 %v761, 127
      %vm763 = vcmp.lt.s32.totalorder %v762, 10
      %v764 = vsel %vm763, %v760, -inf
      %765 = vst [vmem:[%s3] sm:$0xff] %v764
      %766 = vmax.xlane.f32.xlu0 %v764
      %v767 = vpop.xlane.xlu0 %766
      %v768 = vsub.f32 %v764, %v767
      %v769 = vmul.f32 %v768, 1.442695
      %v770 = vpow.pop %v769
      %v771 = vsel %vm763, %v770, 0.0
      %772 = vadd.xlane.f32.xlu0 %v771
      %v773 = vpop.xlane.xlu0 %772
      %v774 = vrcp.pop %v773
      %v775 = vmul.f32 %v771, %v774
      %776 = vst [vmem:[%s4] sm:$0xff] %v775
      %vm777 = vcmp.eq.f32.partialorder %v764, %v767
      %v778 = vsel %vm777, %v762, 128
      %v779 = vand.u32 %v778, 65535
      %v780 = vshra.s32 %v778, 16
      %v781 = vcvt.s32.f32 %v779
      %v782 = vcvt.s32.f32 %v780
      %783 = vmin.xlane.f32.xlu0 %v782
      %v784 = vpop.xlane.xlu0 %783
      %vm785 = vcmp.eq.f32.partialorder %v782, %v784
      %v786 = vsel %vm785, %v781, inf
      %787 = vmin.xlane.f32.xlu0 %v786
      %v788 = vpop.xlane.xlu0 %787
      %v789 = vcvt.f32.s32 %v788
      %v790 = vcvt.f32.s32 %v784
      %v791 = vshll.u32 %v790, 16
      %v792 = vadd.s32 %v791, %v789
      %793 = vst [vmem:[%s5] sm:$0xff] %v792
    $region25: #{_head_call.1} parent=1 // pred_fallthru
      _
    // Predicated region
    $region26: #{_head_call.1} parent=1 // pred_check
      _
    $region27: #{_head_call.1} parent=1 // pred_check_branch
      %795 = sbr.rel (0) target = $region29
    $region28: #{_head_call.1} parent=1 // pred_region
      _
    $region29: #{_head_call.1} parent=1 // pred_fallthru
      _
    // Predicated region
    $region30: #{_head_call.1} parent=1 // pred_check
      _
    $region31: #{_head_call.1} parent=1 // pred_check_branch
      %797 = sbr.rel (0) target = $region33
    $region32: #{_head_call.1} parent=1 // pred_region
      _
    $region33: #{_head_call.1} parent=1 // pred_fallthru
      _
    // Predicated region
    $region34: #{_head_call.1} parent=1 // pred_check
      _
    $region35: #{_head_call.1} parent=1 // pred_check_branch
      %799 = sbr.rel (0) target = $region37
    $region36: #{_head_call.1} parent=1 // pred_region
      _
    $region37: #{_head_call.1} parent=1 // pred_fallthru
      _
    // Predicated region
    $region38: #{_head_call.1} parent=1 // pred_check
      _
    $region39: #{_head_call.1} parent=1 // pred_check_branch
      %801 = sbr.rel (0) target = $region41
    $region40: #{_head_call.1} parent=1 // pred_region
      _
    $region41: #{_head_call.1} parent=1 // pred_fallthru
      _
    // Predicated region
    $region42: #{_head_call.1} parent=1 // pred_check
      _
    $region43: #{_head_call.1} parent=1 // pred_check_branch
      %803 = sbr.rel (0) target = $region45
    $region44: #{_head_call.1} parent=1 // pred_region
      _
    $region45: #{_head_call.1} parent=1 // pred_fallthru
      _
    // Predicated region
    $region46: #{_head_call.1} parent=1 // pred_check
      _
    $region47: #{_head_call.1} parent=1 // pred_check_branch
      %805 = sbr.rel (0) target = $region49
    $region48: #{_head_call.1} parent=1 // pred_region
      _
    $region49: #{_head_call.1} parent=1 // pred_fallthru
      _
    %806 = vsyncpa [#allocation4], 1

</llo_original>
